<compile_context>
chip_gen: v6e
topology: v6e:2x2x1
jax: 0.10.0
libtpu: 0.0.40
codegen_flags: <defaults>
</compile_context>

<pallas_src>
import math
import numpy as np

import jax
import jax.numpy as jnp
from jax.experimental import pallas as pl
from jax.experimental.pallas import tpu as pltpu


def _global_predictor_kernel(x_ref, bn_ref, w1_ref, b1_ref, w2_ref, b2_ref,
                             out_ref):
    """One batch tile of the fused forward pass.  All refs live in VMEM.

    x_ref  : (TB, d_model)   batch tile of inputs
    bn_ref : (4, d_model)    rows = running_mean, running_var, gamma, beta
    w1_ref : (d_model, d_h)  fc1 weight (x @ W layout)
    b1_ref : (1, d_h)        fc1 bias
    w2_ref : (d_h, d_out)    fc2 weight (h @ W layout)
    b2_ref : (1, d_out)      fc2 bias
    out_ref: (TB, d_out)     sigmoid output tile
    """
    eps = 1e-5
    x = x_ref[...]                                              # (TB, d_model)

    # BatchNorm1d (eval mode, running stats) folded into one scale/shift.
    scale = bn_ref[2:3, :] * jax.lax.rsqrt(bn_ref[1:2, :] + eps)  # gamma/sqrt(var+eps)
    shift = bn_ref[3:4, :] - bn_ref[0:1, :] * scale               # beta - mean*scale
    xn = x * scale + shift                                        # (TB, d_model)

    # fc1 + tanh: a single lane-dense MXU matmul over the whole batch tile.
    h = jnp.tanh(
        jnp.dot(xn, w1_ref[...], preferred_element_type=jnp.float32)
        + b1_ref[...])                                            # (TB, d_h)
    # Dropout is identity in eval mode.

    # fc2 + sigmoid.
    z = (jnp.dot(h, w2_ref[...], preferred_element_type=jnp.float32)
         + b2_ref[...])                                           # (TB, d_out)
    out_ref[...] = 1.0 / (1.0 + jnp.exp(-z))


def global_predictor(x, params, *, batch_tile=8):
    """x: (B, d_model) float32. Returns (B, d_out) float32."""
    B, d_model = x.shape
    d_h = params["w1"].shape[1]
    d_out = params["w2"].shape[1]

    # Pad the batch up to a multiple of the (8-sublane-aligned) tile.
    TB = batch_tile
    Bp = ((B + TB - 1) // TB) * TB
    if Bp != B:
        x = jnp.pad(x, ((0, Bp - B), (0, 0)))

    out = pl.pallas_call(
        _global_predictor_kernel,
        out_shape=jax.ShapeDtypeStruct((Bp, d_out), jnp.float32),
        grid_spec=pltpu.PrefetchScalarGridSpec(
            num_scalar_prefetch=0,
            grid=(Bp // TB,),
            in_specs=[
                pl.BlockSpec((TB, d_model), lambda i: (i, 0)),   # x tile
                pl.BlockSpec((4, d_model), lambda i: (0, 0)),    # BN params (resident)
                pl.BlockSpec((d_model, d_h), lambda i: (0, 0)),  # fc1 weight
                pl.BlockSpec((1, d_h), lambda i: (0, 0)),        # fc1 bias
                pl.BlockSpec((d_h, d_out), lambda i: (0, 0)),    # fc2 weight
                pl.BlockSpec((1, d_out), lambda i: (0, 0)),      # fc2 bias
            ],
            out_specs=pl.BlockSpec((TB, d_out), lambda i: (i, 0)),
        ),
        compiler_params=pltpu.CompilerParams(
            dimension_semantics=("parallel",)),  # batch tiles split across TCs on v7x
    )(x, params["bn"], params["w1"], params["b1"], params["w2"], params["b2"])
    return out[:B]


def init_params(key, d_model, d_h, d_out):
    """Deterministic synthetic parameters matching PyTorch layer shapes."""
    k = jax.random.split(key, 8)
    s1 = 1.0 / math.sqrt(d_model)
    w1 = jax.random.uniform(k[0], (d_model, d_h), jnp.float32, -s1, s1)
    b1 = jax.random.uniform(k[1], (1, d_h), jnp.float32, -s1, s1)
    s2 = 1.0 / math.sqrt(d_h)
    w2 = jax.random.uniform(k[2], (d_h, d_out), jnp.float32, -s2, s2)
    b2 = jax.random.uniform(k[3], (1, d_out), jnp.float32, -s2, s2)
    running_mean = 0.1 * jax.random.normal(k[4], (d_model,), jnp.float32)
    running_var = jax.random.uniform(k[5], (d_model,), jnp.float32, 0.5, 1.5)
    gamma = 1.0 + 0.05 * jax.random.normal(k[6], (d_model,), jnp.float32)
    beta = 0.05 * jax.random.normal(k[7], (d_model,), jnp.float32)
    bn = jnp.stack([running_mean, running_var, gamma, beta], axis=0)  # (4, d_model)
    return dict(bn=bn, w1=w1, b1=b1, w2=w2, b2=b2)


def reference(x, params):
    """Pure-JAX reference mirroring the PyTorch forward (eval mode)."""
    eps = 1e-5
    mean, var, gamma, beta = (params["bn"][i] for i in range(4))
    xn = (x - mean) / jnp.sqrt(var + eps) * gamma + beta
    h = jnp.tanh(xn @ params["w1"] + params["b1"])
    # Dropout is identity in eval mode.
    z = h @ params["w2"] + params["b2"]
    return jax.nn.sigmoid(z)


if __name__ == "__main__":
    B, d_model, d_h, d_out = 16, 32, 128, 1   # small, lane-dense hidden width

    key = jax.random.PRNGKey(0)
    kx, kp = jax.random.split(key)
    x = jax.random.normal(kx, (B, d_model), jnp.float32)
    params = init_params(kp, d_model, d_h, d_out)

    out = global_predictor(x, params)
    out = jax.block_until_ready(out)

    ref = reference(x, params)
    assert out.shape == (B, d_out)
    np.testing.assert_allclose(np.asarray(out), np.asarray(ref),
                               rtol=1e-4, atol=1e-4)
    print("KERNEL_OK")
</pallas_src>

<mosaic_0001>
module attributes {stable_mosaic.version = 11 : i64} {
  func.func @_global_predictor_kernel(%arg0: i32, %arg1: memref<8x32xf32, #tpu.memory_space<vmem>>, %arg2: memref<4x32xf32, #tpu.memory_space<vmem>>, %arg3: memref<32x128xf32, #tpu.memory_space<vmem>>, %arg4: memref<1x128xf32, #tpu.memory_space<vmem>>, %arg5: memref<128x1xf32, #tpu.memory_space<vmem>>, %arg6: memref<1x1xf32, #tpu.memory_space<vmem>>, %arg7: memref<8x1xf32, #tpu.memory_space<vmem>>) attributes {dimension_semantics = [#tpu.dimension_semantics<parallel>], iteration_bounds = array<i64: 2>, scalar_prefetch = 0 : i64, scratch_operands = 0 : i64, tpu.core_type = #tpu.core_type<tc>, window_params = [{transform_indices = @transform_0, window_bounds = array<i64: 8, 32>}, {pipeline_mode = #tpu.pipeline_mode<synchronous>, transform_indices = @transform_1, window_bounds = array<i64: 4, 32>}, {pipeline_mode = #tpu.pipeline_mode<synchronous>, transform_indices = @transform_2, window_bounds = array<i64: 32, 128>}, {pipeline_mode = #tpu.pipeline_mode<synchronous>, transform_indices = @transform_3, window_bounds = array<i64: 1, 128>}, {pipeline_mode = #tpu.pipeline_mode<synchronous>, transform_indices = @transform_4, window_bounds = array<i64: 128, 1>}, {pipeline_mode = #tpu.pipeline_mode<synchronous>, transform_indices = @transform_5, window_bounds = array<i64: 1, 1>}, {transform_indices = @transform_6, window_bounds = array<i64: 8, 1>}]} {
    %c0 = arith.constant 0 : index
    %c0_0 = arith.constant 0 : index
    %0 = vector.load %arg1[%c0, %c0_0] : memref<8x32xf32, #tpu.memory_space<vmem>>, vector<8x32xf32>
    %c2 = arith.constant 2 : index
    %c0_1 = arith.constant 0 : index
    %1 = vector.load %arg2[%c2, %c0_1] : memref<4x32xf32, #tpu.memory_space<vmem>>, vector<1x32xf32>
    %c1 = arith.constant 1 : index
    %c0_2 = arith.constant 0 : index
    %2 = vector.load %arg2[%c1, %c0_2] : memref<4x32xf32, #tpu.memory_space<vmem>>, vector<1x32xf32>
    %cst = arith.constant 9.99999974E-6 : f32
    %3 = vector.broadcast %cst : f32 to vector<1x32xf32>
    %4 = arith.addf %2, %3 : vector<1x32xf32>
    %5 = math.rsqrt %4 : vector<1x32xf32>
    %6 = arith.mulf %1, %5 : vector<1x32xf32>
    %c3 = arith.constant 3 : index
    %c0_3 = arith.constant 0 : index
    %7 = vector.load %arg2[%c3, %c0_3] : memref<4x32xf32, #tpu.memory_space<vmem>>, vector<1x32xf32>
    %c0_4 = arith.constant 0 : index
    %c0_5 = arith.constant 0 : index
    %8 = vector.load %arg2[%c0_4, %c0_5] : memref<4x32xf32, #tpu.memory_space<vmem>>, vector<1x32xf32>
    %9 = arith.mulf %8, %6 : vector<1x32xf32>
    %10 = arith.subf %7, %9 : vector<1x32xf32>
    %11 = vector.broadcast %6 : vector<1x32xf32> to vector<8x32xf32>
    %12 = arith.mulf %0, %11 : vector<8x32xf32>
    %13 = vector.broadcast %10 : vector<1x32xf32> to vector<8x32xf32>
    %14 = arith.addf %12, %13 : vector<8x32xf32>
    %c0_6 = arith.constant 0 : index
    %c0_7 = arith.constant 0 : index
    %15 = vector.load %arg3[%c0_6, %c0_7] : memref<32x128xf32, #tpu.memory_space<vmem>>, vector<32x128xf32>
    %cst_8 = arith.constant dense<0.000000e+00> : vector<8x128xf32>
    %16 = tpu.matmul %14, %15, %cst_8 {dimension_numbers = #tpu.dot_dimension_numbers<[1], [0], [0], [1], [0, 0, 1, 1], [], []>} : vector<8x32xf32>, vector<32x128xf32>, vector<8x128xf32> -> vector<8x128xf32>
    %c0_9 = arith.constant 0 : index
    %c0_10 = arith.constant 0 : index
    %17 = vector.load %arg4[%c0_9, %c0_10] : memref<1x128xf32, #tpu.memory_space<vmem>>, vector<1x128xf32>
    %18 = vector.broadcast %17 : vector<1x128xf32> to vector<8x128xf32>
    %19 = arith.addf %16, %18 : vector<8x128xf32>
    %20 = math.tanh %19 : vector<8x128xf32>
    %c0_11 = arith.constant 0 : index
    %c0_12 = arith.constant 0 : index
    %21 = vector.load %arg5[%c0_11, %c0_12] : memref<128x1xf32, #tpu.memory_space<vmem>>, vector<128x1xf32>
    %cst_13 = arith.constant dense<0.000000e+00> : vector<8x1xf32>
    %22 = tpu.matmul %20, %21, %cst_13 {dimension_numbers = #tpu.dot_dimension_numbers<[1], [0], [0], [1], [0, 0, 1, 1], [], []>} : vector<8x128xf32>, vector<128x1xf32>, vector<8x1xf32> -> vector<8x1xf32>
    %c0_14 = arith.constant 0 : index
    %c0_15 = arith.constant 0 : index
    %23 = vector.load %arg6[%c0_14, %c0_15] : memref<1x1xf32, #tpu.memory_space<vmem>>, vector<1x1xf32>
    %24 = vector.broadcast %23 : vector<1x1xf32> to vector<8x1xf32>
    %25 = arith.addf %22, %24 : vector<8x1xf32>
    %cst_16 = arith.constant 0.000000e+00 : f32
    %26 = vector.broadcast %cst_16 : f32 to vector<8x1xf32>
    %27 = arith.subf %26, %25 : vector<8x1xf32>
    %28 = math.exp %27 : vector<8x1xf32>
    %cst_17 = arith.constant 1.000000e+00 : f32
    %29 = vector.broadcast %cst_17 : f32 to vector<8x1xf32>
    %30 = arith.addf %29, %28 : vector<8x1xf32>
    %cst_18 = arith.constant 1.000000e+00 : f32
    %31 = vector.broadcast %cst_18 : f32 to vector<8x1xf32>
    %32 = arith.divf %31, %30 : vector<8x1xf32>
    %c0_19 = arith.constant 0 : index
    %c0_20 = arith.constant 0 : index
    %33 = vector.load %arg7[%c0_19, %c0_20] : memref<8x1xf32, #tpu.memory_space<vmem>>, vector<8x1xf32>
    tpu.vector_store %arg7[%c0_19, %c0_20], %32 {strides = array<i32>} : memref<8x1xf32, #tpu.memory_space<vmem>>, vector<8x1xf32>,
    return
  }
  func.func @transform_0(%arg0: i32) -> (i32, i32) {
    %c0_i32 = arith.constant 0 : i32
    %c0_i32_0 = arith.constant 0 : i32
    return %arg0, %c0_i32 : i32, i32
  }
  func.func @transform_1(%arg0: i32) -> (i32, i32) {
    %c0_i32 = arith.constant 0 : i32
    %c0_i32_0 = arith.constant 0 : i32
    %c0_i32_1 = arith.constant 0 : i32
    return %c0_i32, %c0_i32_0 : i32, i32
  }
  func.func @transform_2(%arg0: i32) -> (i32, i32) {
    %c0_i32 = arith.constant 0 : i32
    %c0_i32_0 = arith.constant 0 : i32
    %c0_i32_1 = arith.constant 0 : i32
    return %c0_i32, %c0_i32_0 : i32, i32
  }
  func.func @transform_3(%arg0: i32) -> (i32, i32) {
    %c0_i32 = arith.constant 0 : i32
    %c0_i32_0 = arith.constant 0 : i32
    %c0_i32_1 = arith.constant 0 : i32
    return %c0_i32, %c0_i32_0 : i32, i32
  }
  func.func @transform_4(%arg0: i32) -> (i32, i32) {
    %c0_i32 = arith.constant 0 : i32
    %c0_i32_0 = arith.constant 0 : i32
    %c0_i32_1 = arith.constant 0 : i32
    return %c0_i32, %c0_i32_0 : i32, i32
  }
  func.func @transform_5(%arg0: i32) -> (i32, i32) {
    %c0_i32 = arith.constant 0 : i32
    %c0_i32_0 = arith.constant 0 : i32
    %c0_i32_1 = arith.constant 0 : i32
    return %c0_i32, %c0_i32_0 : i32, i32
  }
  func.func @transform_6(%arg0: i32) -> (i32, i32) {
    %c0_i32 = arith.constant 0 : i32
    %c0_i32_0 = arith.constant 0 : i32
    return %arg0, %c0_i32 : i32, i32
  }
}

</mosaic_0001>

<llo_original>
// kernel: tpu_custom_call.1
$region0: #{tpu_custom_call.1}
  #allocation0 [shape = 'u32[]', space=smem, size = 0x4, offset = 0x4, fixed_abs, tag = 'smem constant byte address 0x4 - core index']
  #allocation1 [shape = 'u32[144,128]{1,0:T(1,128)}', space=vmem, size = 0x12000, scoped, tag = 'internal scratch']
  #allocation2 [shape = 'f32[1,1]{1,0:T(1,128)S(1)}', space=vmem, size = 0x200, scoped, tag = 'scoped memory for tpu_custom_call.1']
  %s0 = inlined_call_operand.vmem [shape: f32[16,32], index: 0, kind: input, shape index: {}]
  %s1 = inlined_call_operand.vmem [shape: f32[4,32], index: 1, kind: input, shape index: {}]
  %s2 = inlined_call_operand.vmem [shape: f32[32,128], index: 2, kind: input, shape index: {}]
  %s3 = inlined_call_operand.vmem [shape: f32[1,128], index: 3, kind: input, shape index: {}]
  %s4 = inlined_call_operand.vmem [shape: f32[128,1], index: 4, kind: input, shape index: {}]
  %s5 = inlined_call_operand.<no memory space> [shape: f32[1,1], index: 5, kind: input, shape index: {}]
  %s6 = inlined_call_operand.vmem [shape: f32[16,1], index: 6, kind: output, shape index: {}]
  %s7 = sld [smem:[#allocation0]]
  $region57: #{tpu_custom_call.1} parent=0
    _
  %s9 = ssub.s32 1, %s7
  %s10 = scalar_select 0, %s9, %s7
  %v11 = vstv %s5
  %12 = vst [vmem:[#allocation2] sm:$0x1] %v11
  loop: start=0, step=1, limit=4
  $region2: #{tpu_custom_call.1} parent=0 // loop_pre_header
    _
  $region3: #{tpu_custom_call.1} parent=0 // loop_header
    %s14 = sphi 0, %s18
    %p15 = scmp.ge.s32.totalorder %s14, 4
    %s24 = sphi 0, %s26
    %s27 = sphi 0, %s24
    %s28 = sphi 0, %s27
    %s44 = sphi 0, %s28
    %s48 = sphi 0, %s48
    %s50 = sphi 0, %s48
    %s51 = sphi 0, %s50
    %s65 = sphi 0, %s51
    %s69 = sphi 0, %s69
    %s71 = sphi 0, %s69
    %s72 = sphi 0, %s71
    %s86 = sphi 0, %s72
    %s90 = sphi 0, %s90
    %s92 = sphi 0, %s90
    %s93 = sphi 0, %s92
    %s107 = sphi 0, %s93
    %s111 = sphi 0, %s111
    %s113 = sphi 0, %s111
    %s114 = sphi 0, %s113
    %s128 = sphi 0, %s114
    %s132 = sphi 0, %s132
    %s134 = sphi 0, %s132
    %s135 = sphi 0, %s134
    %s149 = sphi 0, %s135
    %s155 = sphi 0, %s157
    %s158 = sphi 0, %s155
    %s159 = sphi 0, %s158
    %s175 = sphi 0, %s159
  $region4: #{tpu_custom_call.1} parent=0 // loop_header_branch
    %17 = sbr.rel (%p15) target = $region8
  $region5: #{tpu_custom_call.1} parent=0 // loop_body
    %s19 = ssub.s32 %s14, 1
    %s20 = ssub.s32 %s14, 2
    %s21 = sadd.s32 %s14, 1
    %s22 = ssub.s32 %s14, %s21
    %p23 = scmp.eq.s32.totalorder %s22, 0
    %s25 = sadd.s32 %s24, 1
    %s26 = scalar_select %p23, %s24, %s25
    %p29 = pneg %p23
    %p30 = scmp.eq.s32.totalorder %s14, 1
    %p31 = por %p29, %p30
    %p32 = scmp.ne.s32.totalorder %s24, %s27
    %p33 = scmp.eq.s32.totalorder %s14, 0
    %p34 = por %p32, %p33
    %p35 = scmp.ne.s32.totalorder %s24, %s27
    %p36 = scmp.eq.s32.totalorder %s19, 1
    %p37 = por %p35, %p36
    %p38 = scmp.ne.s32.totalorder %s27, %s28
    %p39 = scmp.eq.s32.totalorder %s19, 0
    %p40 = por %p38, %p39
    %p41 = scmp.ne.s32.totalorder %s27, %s28
    %p42 = scmp.eq.s32.totalorder %s20, 1
    %p43 = por %p41, %p42
    %p45 = scmp.ne.s32.totalorder %s28, %s44
    %p46 = scmp.eq.s32.totalorder %s20, 0
    %p47 = por %p45, %p46
    %s49 = sadd.s32 %s48, 1
    %p52 = scmp.eq.s32.totalorder %s14, 1
    %p53 = scmp.ne.s32.totalorder %s48, %s50
    %p54 = scmp.eq.s32.totalorder %s14, 0
    %p55 = por %p53, %p54
    %p56 = scmp.ne.s32.totalorder %s48, %s50
    %p57 = scmp.eq.s32.totalorder %s19, 1
    %p58 = por %p56, %p57
    %p59 = scmp.ne.s32.totalorder %s50, %s51
    %p60 = scmp.eq.s32.totalorder %s19, 0
    %p61 = por %p59, %p60
    %p62 = scmp.ne.s32.totalorder %s50, %s51
    %p63 = scmp.eq.s32.totalorder %s20, 1
    %p64 = por %p62, %p63
    %p66 = scmp.ne.s32.totalorder %s51, %s65
    %p67 = scmp.eq.s32.totalorder %s20, 0
    %p68 = por %p66, %p67
    %s70 = sadd.s32 %s69, 1
    %p73 = scmp.eq.s32.totalorder %s14, 1
    %p74 = scmp.ne.s32.totalorder %s69, %s71
    %p75 = scmp.eq.s32.totalorder %s14, 0
    %p76 = por %p74, %p75
    %p77 = scmp.ne.s32.totalorder %s69, %s71
    %p78 = scmp.eq.s32.totalorder %s19, 1
    %p79 = por %p77, %p78
    %p80 = scmp.ne.s32.totalorder %s71, %s72
    %p81 = scmp.eq.s32.totalorder %s19, 0
    %p82 = por %p80, %p81
    %p83 = scmp.ne.s32.totalorder %s71, %s72
    %p84 = scmp.eq.s32.totalorder %s20, 1
    %p85 = por %p83, %p84
    %p87 = scmp.ne.s32.totalorder %s72, %s86
    %p88 = scmp.eq.s32.totalorder %s20, 0
    %p89 = por %p87, %p88
    %s91 = sadd.s32 %s90, 1
    %p94 = scmp.eq.s32.totalorder %s14, 1
    %p95 = scmp.ne.s32.totalorder %s90, %s92
    %p96 = scmp.eq.s32.totalorder %s14, 0
    %p97 = por %p95, %p96
    %p98 = scmp.ne.s32.totalorder %s90, %s92
    %p99 = scmp.eq.s32.totalorder %s19, 1
    %p100 = por %p98, %p99
    %p101 = scmp.ne.s32.totalorder %s92, %s93
    %p102 = scmp.eq.s32.totalorder %s19, 0
    %p103 = por %p101, %p102
    %p104 = scmp.ne.s32.totalorder %s92, %s93
    %p105 = scmp.eq.s32.totalorder %s20, 1
    %p106 = por %p104, %p105
    %p108 = scmp.ne.s32.totalorder %s93, %s107
    %p109 = scmp.eq.s32.totalorder %s20, 0
    %p110 = por %p108, %p109
    %s112 = sadd.s32 %s111, 1
    %p115 = scmp.eq.s32.totalorder %s14, 1
    %p116 = scmp.ne.s32.totalorder %s111, %s113
    %p117 = scmp.eq.s32.totalorder %s14, 0
    %p118 = por %p116, %p117
    %p119 = scmp.ne.s32.totalorder %s111, %s113
    %p120 = scmp.eq.s32.totalorder %s19, 1
    %p121 = por %p119, %p120
    %p122 = scmp.ne.s32.totalorder %s113, %s114
    %p123 = scmp.eq.s32.totalorder %s19, 0
    %p124 = por %p122, %p123
    %p125 = scmp.ne.s32.totalorder %s113, %s114
    %p126 = scmp.eq.s32.totalorder %s20, 1
    %p127 = por %p125, %p126
    %p129 = scmp.ne.s32.totalorder %s114, %s128
    %p130 = scmp.eq.s32.totalorder %s20, 0
    %p131 = por %p129, %p130
    %s133 = sadd.s32 %s132, 1
    %p136 = scmp.eq.s32.totalorder %s14, 1
    %p137 = scmp.ne.s32.totalorder %s132, %s134
    %p138 = scmp.eq.s32.totalorder %s14, 0
    %p139 = por %p137, %p138
    %p140 = scmp.ne.s32.totalorder %s132, %s134
    %p141 = scmp.eq.s32.totalorder %s19, 1
    %p142 = por %p140, %p141
    %p143 = scmp.ne.s32.totalorder %s134, %s135
    %p144 = scmp.eq.s32.totalorder %s19, 0
    %p145 = por %p143, %p144
    %p146 = scmp.ne.s32.totalorder %s134, %s135
    %p147 = scmp.eq.s32.totalorder %s20, 1
    %p148 = por %p146, %p147
    %p150 = scmp.ne.s32.totalorder %s135, %s149
    %p151 = scmp.eq.s32.totalorder %s20, 0
    %p152 = por %p150, %p151
    %s153 = ssub.s32 %s14, %s21
    %p154 = scmp.eq.s32.totalorder %s153, 0
    %s156 = sadd.s32 %s155, 1
    %s157 = scalar_select %p154, %s155, %s156
    %p160 = pneg %p154
    %p161 = scmp.eq.s32.totalorder %s14, 1
    %p162 = por %p160, %p161
    %p163 = scmp.ne.s32.totalorder %s155, %s158
    %p164 = scmp.eq.s32.totalorder %s14, 0
    %p165 = por %p163, %p164
    %p166 = scmp.ne.s32.totalorder %s155, %s158
    %p167 = scmp.eq.s32.totalorder %s19, 1
    %p168 = por %p166, %p167
    %p169 = scmp.ne.s32.totalorder %s158, %s159
    %p170 = scmp.eq.s32.totalorder %s19, 0
    %p171 = por %p169, %p170
    %p172 = scmp.ne.s32.totalorder %s158, %s159
    %p173 = scmp.eq.s32.totalorder %s20, 1
    %p174 = por %p172, %p173
    %p176 = scmp.ne.s32.totalorder %s159, %s175
    %p177 = scmp.eq.s32.totalorder %s20, 0
    %p178 = por %p176, %p177
    %p179 = scmp.le.s32.totalorder 1, %s14
    %p180 = scmp.lt.s32.totalorder %s14, 3
    %p181 = pnand %p179, %p180
    %p182 = pneg %p181
    // Predicated region
    $region9: #{tpu_custom_call.1} parent=5 // pred_check
      _
    $region10: #{tpu_custom_call.1} parent=5 // pred_check_branch
      %184 = sbr.rel (%p181) target = $region12
    $region11: #{tpu_custom_call.1} parent=5 // pred_region
      %s185 = ssub.s32 %s14, 1
      // Predicated region
      $region13: #{tpu_custom_call.1} parent=11 // pred_check
        %p186 = pneg %p61
      $region14: #{tpu_custom_call.1} parent=11 // pred_check_branch
        %188 = sbr.rel (%p186) target = $region16
      $region15: #{tpu_custom_call.1} parent=11 // pred_region
        _
      $region16: #{tpu_custom_call.1} parent=11 // pred_fallthru
        _
      // Predicated region
      $region17: #{tpu_custom_call.1} parent=11 // pred_check
        %p189 = pneg %p82
      $region18: #{tpu_custom_call.1} parent=11 // pred_check_branch
        %191 = sbr.rel (%p189) target = $region20
      $region19: #{tpu_custom_call.1} parent=11 // pred_region
        _
      $region20: #{tpu_custom_call.1} parent=11 // pred_fallthru
        _
      // Predicated region
      $region21: #{tpu_custom_call.1} parent=11 // pred_check
        %p192 = pneg %p103
      $region22: #{tpu_custom_call.1} parent=11 // pred_check_branch
        %194 = sbr.rel (%p192) target = $region24
      $region23: #{tpu_custom_call.1} parent=11 // pred_region
        _
      $region24: #{tpu_custom_call.1} parent=11 // pred_fallthru
        _
      // Predicated region
      $region25: #{tpu_custom_call.1} parent=11 // pred_check
        %p195 = pneg %p124
      $region26: #{tpu_custom_call.1} parent=11 // pred_check_branch
        %197 = sbr.rel (%p195) target = $region28
      $region27: #{tpu_custom_call.1} parent=11 // pred_region
        _
      $region28: #{tpu_custom_call.1} parent=11 // pred_fallthru
        _
      // Predicated region
      $region29: #{tpu_custom_call.1} parent=11 // pred_check
        %p198 = pneg %p145
      $region30: #{tpu_custom_call.1} parent=11 // pred_check_branch
        %200 = sbr.rel (%p198) target = $region32
      $region31: #{tpu_custom_call.1} parent=11 // pred_region
        _
      $region32: #{tpu_custom_call.1} parent=11 // pred_fallthru
        _
    $region12: #{tpu_custom_call.1} parent=5 // pred_fallthru
      _
    %p201 = scmp.lt.s32.totalorder %s14, 2
    // Predicated region
    $region33: #{tpu_custom_call.1} parent=5 // pred_check
      %p202 = pneg %p201
    $region34: #{tpu_custom_call.1} parent=5 // pred_check_branch
      %204 = sbr.rel (%p202) target = $region36
    $region35: #{tpu_custom_call.1} parent=5 // pred_region
      // Predicated region
      $region37: #{tpu_custom_call.1} parent=35 // pred_check
        %p205 = pneg %p34
      $region38: #{tpu_custom_call.1} parent=35 // pred_check_branch
        %207 = sbr.rel (%p205) target = $region40
      $region39: #{tpu_custom_call.1} parent=35 // pred_region
        %p208 = scmp.lt.s32.totalorder %s14, 1
        %s209 = scalar_select %p208, %s14, 1
        %s210 = smul.addr %s209, 8
        %s211 = scalar_lea.vmem %s0, %s210
      $region40: #{tpu_custom_call.1} parent=35 // pred_fallthru
        _
    $region36: #{tpu_custom_call.1} parent=5 // pred_fallthru
      _
    %p212 = scmp.le.s32.totalorder 1, %s14
    %p213 = scmp.lt.s32.totalorder %s14, 3
    %p214 = pnand %p212, %p213
    %p215 = pneg %p214
    // Predicated region
    $region41: #{tpu_custom_call.1} parent=5 // pred_check
      _
    $region42: #{tpu_custom_call.1} parent=5 // pred_check_branch
      %217 = sbr.rel (%p214) target = $region44
    $region43: #{tpu_custom_call.1} parent=5 // pred_region
      %s218 = ssub.s32 %s14, 1
      %p219 = scmp.lt.s32.totalorder %s19, 1
      %s220 = scalar_select %p219, %s19, 1
      %s221 = smul.addr %s220, 8
      %s222 = scalar_lea.vmem %s0, %s221
      %p223 = pneg %p40
      %p224 = pneg %p37
      %p225 = pneg %p61
      %p226 = pneg %p58
      %p227 = pneg %p82
      %p228 = pneg %p79
      %p229 = pneg %p103
      %p230 = pneg %p100
      %p231 = pneg %p124
      %p232 = pneg %p121
      %p233 = pneg %p145
      %p234 = pneg %p142
      %p235 = pneg %p171
      %p236 = pneg %p168
      %p237 = scmp.lt.s32.totalorder %s19, 1
      %s238 = scalar_select %p237, %s19, 1
      %s239 = smul.addr %s238, 8
      %s240 = scalar_lea.vmem %s6, %s239
      %p241 = scmp.lt.s32.totalorder %s19, 1
      %s242 = scalar_select %p241, %s19, 1
      %s243 = smul.addr %s242, 8
      %s244 = scalar_lea.vmem %s0, %s243
      %p245 = scmp.lt.s32.totalorder %s19, 1
      %s246 = scalar_select %p245, %s19, 1
      %s247 = smul.addr %s246, 8
      %s248 = scalar_lea.vmem %s6, %s247
      %v249 = vld [vmem:[%s244] sm:$0xff]
      %v250 = vld [vmem:[%s1 + $0x2] sm:$0x1]
      %v251 = vld [vmem:[%s1 + $0x1] sm:$0x1]
      %v252 = vadd.f32 %v251, 1e-05
      %v253 = vrsqrt.pop %v252
      %v254 = vmul.f32 %v250, %v253
      %v255 = vld [vmem:[%s1 + $0x3] sm:$0x1]
      %v256 = vld [vmem:[%s1] sm:$0x1]
      %v257 = vmul.f32 %v256, %v254
      %v258 = vsub.f32 %v255, %v257
      %v259 = vlaneseq
      %v260 = vshrl.u32 %v259, 7
      %v261 = vsub.s32 0, %v260
      %v262 = vrot.slane %v254, %v261
      %v263 = vmul.f32 %v249, %v262
      %v264 = vlaneseq
      %v265 = vshrl.u32 %v264, 7
      %v266 = vsub.s32 0, %v265
      %v267 = vrot.slane %v258, %v266
      %v268 = vadd.f32 %v263, %v267
      %v269 = vld [vmem:[%s2] sm:$0xff]
      %v270 = vld [vmem:[%s2 + $0x8] sm:$0xff]
      %v271 = vld [vmem:[%s2 + $0x10] sm:$0xff]
      %v272 = vld [vmem:[%s2 + $0x18] sm:$0xff]
      %v273 = vld [vmem:[%s3] sm:$0x1]
      %v275 = vlaneseq
      %v276 = vshrl.u32 %v275, 7
      %v277 = vsub.s32 0, %v276
      %v278 = vrot.slane %v273, %v277
      %vm280 = vcmask 261120
      %v282 = vsel %vm280, %v268, 0
      %284 = vmatprep.subr.mxu0 0.0
      %285 = vmatpush1.msra.mxu0 0.0
      %286 = vmatprep.subr.mxu0 0.0
      %287 = vmatpush1.msra.mxu0 0.0
      %288 = vmatprep.subr.mxu0 0.0
      %289 = vmatpush1.msra.mxu0 0.0
      %290 = vmatprep.subr.mxu0 0.0
      %291 = vmatpush1.msra.mxu0 0.0
      %292 = vmatprep.subr.mxu0 0.0
      %293 = vmatpush1.msra.mxu0 0.0
      %294 = vmatprep.subr.mxu0 0.0
      %295 = vmatpush1.msra.mxu0 0.0
      %296 = vmatprep.subr.mxu0 0.0
      %297 = vmatpush1.msra.mxu0 0.0
      %298 = vmatprep.subr.mxu0 0.0
      %299 = vmatpush1.msra.mxu0 0.0
      %300 = vmatprep.subr.mxu0 0.0
      %301 = vmatpush1.msra.mxu0 0.0
      %302 = vmatprep.subr.mxu0 0.0
      %303 = vmatpush1.msra.mxu0 0.0
      %304 = vmatprep.subr.mxu0 0.0
      %305 = vmatpush1.msra.mxu0 0.0
      %306 = vmatprep.subr.mxu0 0.0
      %307 = vmatpush1.msra.mxu0 0.0
      %308 = vmatprep.subr.mxu0 0.0
      %309 = vmatpush1.msra.mxu0 %v272
      %310 = vmatprep.subr.mxu0 0.0
      %311 = vmatpush1.msra.mxu0 %v271
      %312 = vmatprep.subr.mxu0 0.0
      %313 = vmatpush1.msra.mxu0 %v270
      %314 = vmatprep.subr.mxu0 0.0
      %315 = vmatpush1.msra.mxu0 %v269
      %316 = vmatprep.subr.mxu0 0.0
      %317 = vmatpush2.msra.mxu0 0.0
      %318 = vmatprep.subr.mxu0 0.0
      %319 = vmatpush2.msra.mxu0 0.0
      %320 = vmatprep.subr.mxu0 0.0
      %321 = vmatpush2.msra.mxu0 0.0
      %322 = vmatprep.subr.mxu0 0.0
      %323 = vmatpush2.msra.mxu0 0.0
      %324 = vmatprep.subr.mxu0 0.0
      %325 = vmatpush2.msra.mxu0 0.0
      %326 = vmatprep.subr.mxu0 0.0
      %327 = vmatpush2.msra.mxu0 0.0
      %328 = vmatprep.subr.mxu0 0.0
      %329 = vmatpush2.msra.mxu0 0.0
      %330 = vmatprep.subr.mxu0 0.0
      %331 = vmatpush2.msra.mxu0 0.0
      %332 = vmatprep.subr.mxu0 0.0
      %333 = vmatpush2.msra.mxu0 0.0
      %334 = vmatprep.subr.mxu0 0.0
      %335 = vmatpush2.msra.mxu0 0.0
      %336 = vmatprep.subr.mxu0 0.0
      %337 = vmatpush2.msra.mxu0 0.0
      %338 = vmatprep.subr.mxu0 0.0
      %339 = vmatpush2.msra.mxu0 0.0
      %340 = vmatprep.subr.mxu0 0.0
      %341 = vmatpush2.msra.mxu0 0.0
      %342 = vmatprep.subr.mxu0 0.0
      %343 = vmatpush2.msra.mxu0 0.0
      %344 = vmatprep.subr.mxu0 0.0
      %345 = vmatpush2.msra.mxu0 0.0
      %346 = vmatprep.subr.mxu0 0.0
      %347 = vmatpush2.msra.mxu0 0.0
      %348 = vmatprep.mubr.f32.mxu0 0.0
      %349 = vmatmul.mubr.f32.gmra.mxu0 %v282
      %v350 = vpop.f32.mrf.mxu0
      %v351 = vadd.f32 %v278, %v350
      %v352 = vpop.f32.mrf.mxu0
      %353 = vdwg.mxu0
      %v354 = vtanh.pop %v351
      %v355 = vld [vmem:[%s4] sm:$0xff]
      %v356 = vld [vmem:[%s4 + $0x8] sm:$0xff]
      %v357 = vld [vmem:[%s4 + $0x10] sm:$0xff]
      %v358 = vld [vmem:[%s4 + $0x18] sm:$0xff]
      %v359 = vld [vmem:[%s4 + $0x20] sm:$0xff]
      %v360 = vld [vmem:[%s4 + $0x28] sm:$0xff]
      %v361 = vld [vmem:[%s4 + $0x30] sm:$0xff]
      %v362 = vld [vmem:[%s4 + $0x38] sm:$0xff]
      %v363 = vld [vmem:[%s4 + $0x40] sm:$0xff]
      %v364 = vld [vmem:[%s4 + $0x48] sm:$0xff]
      %v365 = vld [vmem:[%s4 + $0x50] sm:$0xff]
      %v366 = vld [vmem:[%s4 + $0x58] sm:$0xff]
      %v367 = vld [vmem:[%s4 + $0x60] sm:$0xff]
      %v368 = vld [vmem:[%s4 + $0x68] sm:$0xff]
      %v369 = vld [vmem:[%s4 + $0x70] sm:$0xff]
      %v370 = vld [vmem:[%s4 + $0x78] sm:$0xff]
      %v371 = vld [vmem:[#allocation2] sm:$0x1]
      %v373 = vlaneseq
      %v374 = vshrl.u32 %v373, 7
      %v375 = vsub.s32 0, %v374
      %v376 = vrot.slane %v371, %v375
      %378 = vmatprep.subr.mxu0 0.0
      %379 = vmatpush1.msra.mxu0 %v370
      %380 = vmatprep.subr.mxu0 0.0
      %381 = vmatpush1.msra.mxu0 %v369
      %382 = vmatprep.subr.mxu0 0.0
      %383 = vmatpush1.msra.mxu0 %v368
      %384 = vmatprep.subr.mxu0 0.0
      %385 = vmatpush1.msra.mxu0 %v367
      %386 = vmatprep.subr.mxu0 0.0
      %387 = vmatpush1.msra.mxu0 %v366
      %388 = vmatprep.subr.mxu0 0.0
      %389 = vmatpush1.msra.mxu0 %v365
      %390 = vmatprep.subr.mxu0 0.0
      %391 = vmatpush1.msra.mxu0 %v364
      %392 = vmatprep.subr.mxu0 0.0
      %393 = vmatpush1.msra.mxu0 %v363
      %394 = vmatprep.subr.mxu0 0.0
      %395 = vmatpush1.msra.mxu0 %v362
      %396 = vmatprep.subr.mxu0 0.0
      %397 = vmatpush1.msra.mxu0 %v361
      %398 = vmatprep.subr.mxu0 0.0
      %399 = vmatpush1.msra.mxu0 %v360
      %400 = vmatprep.subr.mxu0 0.0
      %401 = vmatpush1.msra.mxu0 %v359
      %402 = vmatprep.subr.mxu0 0.0
      %403 = vmatpush1.msra.mxu0 %v358
      %404 = vmatprep.subr.mxu0 0.0
      %405 = vmatpush1.msra.mxu0 %v357
      %406 = vmatprep.subr.mxu0 0.0
      %407 = vmatpush1.msra.mxu0 %v356
      %408 = vmatprep.subr.mxu0 0.0
      %409 = vmatpush1.msra.mxu0 %v355
      %410 = vmatprep.subr.mxu0 0.0
      %411 = vmatpush2.msra.mxu0 0.0
      %412 = vmatprep.subr.mxu0 0.0
      %413 = vmatpush2.msra.mxu0 0.0
      %414 = vmatprep.subr.mxu0 0.0
      %415 = vmatpush2.msra.mxu0 0.0
      %416 = vmatprep.subr.mxu0 0.0
      %417 = vmatpush2.msra.mxu0 0.0
      %418 = vmatprep.subr.mxu0 0.0
      %419 = vmatpush2.msra.mxu0 0.0
      %420 = vmatprep.subr.mxu0 0.0
      %421 = vmatpush2.msra.mxu0 0.0
      %422 = vmatprep.subr.mxu0 0.0
      %423 = vmatpush2.msra.mxu0 0.0
      %424 = vmatprep.subr.mxu0 0.0
      %425 = vmatpush2.msra.mxu0 0.0
      %426 = vmatprep.subr.mxu0 0.0
      %427 = vmatpush2.msra.mxu0 0.0
      %428 = vmatprep.subr.mxu0 0.0
      %429 = vmatpush2.msra.mxu0 0.0
      %430 = vmatprep.subr.mxu0 0.0
      %431 = vmatpush2.msra.mxu0 0.0
      %432 = vmatprep.subr.mxu0 0.0
      %433 = vmatpush2.msra.mxu0 0.0
      %434 = vmatprep.subr.mxu0 0.0
      %435 = vmatpush2.msra.mxu0 0.0
      %436 = vmatprep.subr.mxu0 0.0
      %437 = vmatpush2.msra.mxu0 0.0
      %438 = vmatprep.subr.mxu0 0.0
      %439 = vmatpush2.msra.mxu0 0.0
      %440 = vmatprep.subr.mxu0 0.0
      %441 = vmatpush2.msra.mxu0 0.0
      %442 = vmatprep.mubr.f32.mxu0 0.0
      %443 = vmatmul.mubr.f32.gmra.mxu0 %v354
      %v444 = vpop.f32.mrf.mxu0
      %v445 = vadd.f32 %v376, %v444
      %v446 = vpop.f32.mrf.mxu0
      %447 = vdwg.mxu0
      %v448 = vsub.f32 0.0, %v445
      %v449 = vmul.f32 %v448, 1.442695
      %v450 = vpow.pop %v449
      %v451 = vadd.f32 %v450, 1.0
      %v452 = vrcp.pop %v451
      %v453 = vmul.f32 1.0, %v452
      %vm454 = vcmask 7168
      %455 = vst.msk [vmem:[%s248] sm:$0xff] %vm454, %v453
      %p456 = scmp.lt.s32.totalorder %s19, 1
      %s457 = scalar_select %p456, %s19, 1
      %s458 = smul.addr %s457, 8
      %s459 = scalar_lea.vmem %s6, %s458
      // Predicated region
      $region45: #{tpu_custom_call.1} parent=43 // pred_check
        %p460 = pneg %p168
      $region46: #{tpu_custom_call.1} parent=43 // pred_check_branch
        %462 = sbr.rel (%p460) target = $region48
      $region47: #{tpu_custom_call.1} parent=43 // pred_region
        _
      $region48: #{tpu_custom_call.1} parent=43 // pred_fallthru
        _
    $region44: #{tpu_custom_call.1} parent=5 // pred_fallthru
      _
    %p463 = scmp.le.s32.totalorder 2, %s14
    // Predicated region
    $region49: #{tpu_custom_call.1} parent=5 // pred_check
      %p464 = pneg %p463
    $region50: #{tpu_custom_call.1} parent=5 // pred_check_branch
      %466 = sbr.rel (%p464) target = $region52
    $region51: #{tpu_custom_call.1} parent=5 // pred_region
      %s467 = ssub.s32 %s14, 2
      // Predicated region
      $region53: #{tpu_custom_call.1} parent=51 // pred_check
        %p468 = pneg %p174
      $region54: #{tpu_custom_call.1} parent=51 // pred_check_branch
        %470 = sbr.rel (%p468) target = $region56
      $region55: #{tpu_custom_call.1} parent=51 // pred_region
        %p471 = scmp.lt.s32.totalorder %s20, 1
        %s472 = scalar_select %p471, %s20, 1
        %s473 = smul.addr %s472, 8
        %s474 = scalar_lea.vmem %s6, %s473
      $region56: #{tpu_custom_call.1} parent=51 // pred_fallthru
        _
    $region52: #{tpu_custom_call.1} parent=5 // pred_fallthru
      _
  $region6: #{tpu_custom_call.1} parent=0 // loop_footer
    %s18 = sadd.s32 1, %s14
  $region7: #{tpu_custom_call.1} parent=0 // loop_footer_branch
    %13 = sbr.rel target = $region3
  $region8: #{tpu_custom_call.1} parent=0 // loop_exit
    _

</llo_original>
